<compile_context>
chip_gen: v5e
topology: v5e:2x2
jax: 0.10.0
libtpu: 0.0.40
codegen_flags: <defaults>
</compile_context>

<pallas_src>
import jax
import jax.numpy as jnp
from jax.experimental import pallas as pl
from jax.experimental.pallas import tpu as pltpu

_MiB = 1024 * 1024


def _upconv_kernel(x_ref, w_ref, o_ref):
    # x_ref: (1, th*W, Cin)       -- th full image rows, NHWC-flattened pixels
    # w_ref: (2, Cin, 2*Cout)     -- grid-invariant; [ki, ci, kj*Cout + co]
    # o_ref: (th, 2, W, 2*Cout)   -- both output-row parities for this tile
    x = x_ref[0]                                   # (th*W, Cin)
    th, _, W, cout2 = o_ref.shape
    for ki in range(2):                            # static unroll: 2 MXU pushes
        y = jnp.dot(x, w_ref[ki], preferred_element_type=jnp.float32)
        # (th*W, cout2) -> (th, W, cout2): minor dim preserved, sublane split;
        # layout-free whenever W % 8 == 0.
        o_ref[:, ki] = y.reshape(th, W, cout2).astype(o_ref.dtype)


def _round_up(x, m):
    return (x + m - 1) // m * m


def _vmem_capacity_bytes():
    # Generation-aware physical VMEM (v5e/v6e: 128 MiB, v7x: 64 MiB per TC).
    try:
        return int(pltpu.get_tpu_info().vmem_capacity_bytes)
    except Exception:
        return 64 * _MiB          # conservative (v7x-sized) fallback


def _pick_row_tile(H, W, cin, cout2, in_itemsize, out_itemsize,
                   target_pixels, vmem_budget, max_th):
    """Pick th = number of image rows per grid step (a divisor of H)."""

    def vmem_bytes(th):
        # (8, 128)-padded VMEM footprints; in/out blocks are double-buffered by
        # the pipeline, and the grid-invariant weight is charged two buffers.
        x_blk = _round_up(th * W, 8) * _round_up(cin, 128) * in_itemsize
        o_blk = th * 2 * _round_up(W, 8) * _round_up(cout2, 128) * out_itemsize
        w_blk = 2 * _round_up(cin, 8) * _round_up(cout2, 128) * in_itemsize
        return 2 * x_blk + 2 * o_blk + 2 * w_blk

    divisors = [d for d in range(1, H + 1) if H % d == 0]
    # (8,128) rule on the flattened pixel axis: th*W must be a multiple of 8,
    # unless the block is the whole per-image pixel axis (th == H).
    ok = [d for d in divisors if (d * W) % 8 == 0] or [H]
    # Keep >=2 parallel grid steps when possible (v7x has 2 TensorCores).
    ok = [d for d in ok if d <= max_th] or [min(ok)]
    fitting = [d for d in ok if vmem_bytes(d) <= vmem_budget]
    if not fitting:
        # TODO(synk): add a secondary split along W (or the flattened N*H axis)
        #             for the case where even the smallest legal tile busts the
        #             budget (only reachable when W % 8 != 0 forces th == H).
        th = min(ok)
    else:
        reach = [d for d in fitting if d * W >= target_pixels]
        th = min(reach) if reach else max(fitting)
    return th, vmem_bytes(th)


def upconv_nhwc(x_nhwc, weight, *, target_pixels=2048, use_bf16=True):
    """Upconv on NHWC input, NHWC output — no layout transposes at all.

    x_nhwc : (N, H, W, Cin)
    weight : (Cin, Cout, 2, 2)   PyTorch ConvTranspose2d weight layout
    returns: (N, 2H, 2W, Cout)
    """
    N, H, W, Cin = x_nhwc.shape
    Cin_w, Cout, kh, kw_ = weight.shape
    assert Cin_w == Cin and (kh, kw_) == (2, 2)

    out_dtype = x_nhwc.dtype
    compute_dtype = (jnp.bfloat16
                     if (use_bf16 and x_nhwc.dtype == jnp.float32)
                     else x_nhwc.dtype)
    cout2 = 2 * Cout

    # Free contiguous reshape to (N, H*W, Cin); the optional bf16 cast is the
    # only XLA-side data movement on the input.
    x_pix = x_nhwc.astype(compute_dtype).reshape(N, H * W, Cin)

    # (Cin, Cout, ki, kj) -> (ki, Cin, kj, Cout) -> (2, Cin, 2*Cout).  Columns
    # of each ki-slice are ordered (kj, co) so the kernel's store is already
    # in interleaved NHWC order.
    w2 = jnp.transpose(weight, (2, 0, 3, 1)).reshape(2, Cin, cout2)
    w2 = w2.astype(compute_dtype)

    in_item = jnp.dtype(compute_dtype).itemsize
    out_item = jnp.dtype(out_dtype).itemsize

    physical = _vmem_capacity_bytes()
    tile_budget = int(0.45 * physical)    # ~28 MiB on v7x, ~57 MiB on v5e/v6e
    vmem_cap = int(0.68 * physical)       # ~43 MiB on v7x, ~87 MiB on v5e/v6e
    max_th = H if N >= 2 else max(1, H // 2)

    th, vmem_est = _pick_row_tile(H, W, Cin, cout2, in_item, out_item,
                                  target_pixels, tile_budget, max_th)
    tpix = th * W
    n_h_tiles = H // th
    grid = (N, n_h_tiles)

    vmem_limit = int(min(vmem_est + 16 * _MiB, vmem_cap))
    if vmem_est + 4 * _MiB > vmem_cap:
        # Forced-fallback tile bigger than the generation-aware cap: permit up
        # to ~85% of physical VMEM rather than failing to compile.
        vmem_limit = int(min(vmem_est + 8 * _MiB, int(0.85 * physical)))

    out4 = pl.pallas_call(
        _upconv_kernel,
        out_shape=jax.ShapeDtypeStruct((N * H, 2, W, cout2), out_dtype),
        grid_spec=pltpu.PrefetchScalarGridSpec(
            num_scalar_prefetch=0,
            grid=grid,
            in_specs=[
                # th full image rows per grid step.
                pl.BlockSpec((1, tpix, Cin), lambda n, ih: (n, ih, 0)),
                # Whole weight, grid-invariant -> DMA'd once, stays resident.
                pl.BlockSpec((2, Cin, cout2), lambda n, ih: (0, 0, 0)),
            ],
            out_specs=pl.BlockSpec(
                (th, 2, W, cout2),
                lambda n, ih: (n * n_h_tiles + ih, 0, 0, 0)),
        ),
        compiler_params=pltpu.CompilerParams(
            dimension_semantics=("parallel", "parallel"),
            vmem_limit_bytes=vmem_limit,
        ),
    )(x_pix, w2)

    # (N*H, 2, W, 2*Cout) is a contiguous (zero-cost) view of the NHWC output
    # (N, 2H, 2W, Cout): the 2x2 scatter already happened inside the kernel.
    return out4.reshape(N, 2 * H, 2 * W, Cout)


def upconv(x_nchw, weight, *, target_pixels=2048, use_bf16=True):
    """Forward of Upconv: ConvTranspose2d(k=2, s=2, p=0, bias=False).

    x_nchw : (N, Cin, H, W)     NCHW (PyTorch convention)
    weight : (Cin, Cout, 2, 2)  PyTorch ConvTranspose2d weight layout
    returns: (N, Cout, 2H, 2W)  NCHW
    """
    assert x_nchw.ndim == 4 and weight.shape[0] == x_nchw.shape[1]
    # TODO(synk): these two boundary transposes (forced by the PyTorch NCHW
    #   contract) are now the dominant HBM cost — the output one reads+writes
    #   the 4x-upsampled tensor.  NHWC end-to-end models should call
    #   upconv_nhwc() directly and pay neither.
    x_nhwc = jnp.transpose(x_nchw, (0, 2, 3, 1))
    out_nhwc = upconv_nhwc(x_nhwc, weight,
                           target_pixels=target_pixels, use_bf16=use_bf16)
    return jnp.transpose(out_nhwc, (0, 3, 1, 2))


if __name__ == "__main__":
    key = jax.random.PRNGKey(0)
    kx, kw, kx2, kw2 = jax.random.split(key, 4)

    # --- config 1: small channels (masked-lane store path, Cin=4 demo) ------
    N, Cin, Cout, H, W = 2, 4, 8, 16, 16
    x = jax.random.normal(kx, (N, Cin, H, W), dtype=jnp.float32)
    weight = jax.random.normal(kw, (Cin, Cout, 2, 2), dtype=jnp.float32) * 0.1

    # Pure-JAX reference of the transposed conv:
    # ref[n, co, 2i+ki, 2j+kj] = sum_ci x[n,ci,i,j] * w[ci,co,ki,kj]
    ref = jnp.einsum("ncij,cokl->noikjl", x, weight).reshape(
        N, Cout, 2 * H, 2 * W)

    out_f32 = jax.block_until_ready(upconv(x, weight, use_bf16=False))
    assert out_f32.shape == (N, Cout, 2 * H, 2 * W)
    assert jnp.allclose(out_f32, ref, atol=1e-5, rtol=1e-5)

    # Default path: bf16 operands, f32 MXU accumulation — looser tolerance.
    out_bf16 = jax.block_until_ready(upconv(x, weight))
    assert jnp.allclose(out_bf16, ref, atol=5e-2, rtol=5e-2)

    # --- config 2: Cout>=64 (lane-dense stores) and N==1 (>=2 parallel tiles)
    N2, Cin2, Cout2, H2, W2 = 1, 8, 64, 8, 16
    x2 = jax.random.normal(kx2, (N2, Cin2, H2, W2), dtype=jnp.float32)
    weight2 = jax.random.normal(kw2, (Cin2, Cout2, 2, 2), dtype=jnp.float32) * 0.1
    ref2 = jnp.einsum("ncij,cokl->noikjl", x2, weight2).reshape(
        N2, Cout2, 2 * H2, 2 * W2)
    out2 = jax.block_until_ready(upconv(x2, weight2))
    assert out2.shape == (N2, Cout2, 2 * H2, 2 * W2)
    assert jnp.allclose(out2, ref2, atol=5e-2, rtol=5e-2)

    print("KERNEL_OK")
</pallas_src>

<mosaic_0001>
module attributes {stable_mosaic.version = 11 : i64} {
  func.func @_upconv_kernel(%arg0: i32, %arg1: i32, %arg2: memref<1x256x4xf32, #tpu.memory_space<vmem>>, %arg3: memref<2x4x16xf32, #tpu.memory_space<vmem>>, %arg4: memref<16x2x16x16xf32, #tpu.memory_space<vmem>>) attributes {dimension_semantics = [#tpu.dimension_semantics<parallel>, #tpu.dimension_semantics<parallel>], iteration_bounds = array<i64: 2, 1>, scalar_prefetch = 0 : i64, scratch_operands = 0 : i64, tpu.core_type = #tpu.core_type<tc>, window_params = [{transform_indices = @transform_0, window_bounds = array<i64: 1, 256, 4>}, {pipeline_mode = #tpu.pipeline_mode<synchronous>, transform_indices = @transform_1, window_bounds = array<i64: 2, 4, 16>}, {transform_indices = @transform_2, window_bounds = array<i64: 16, 2, 16, 16>}]} {
    %c0 = arith.constant 0 : index
    %c0_0 = arith.constant 0 : index
    %c0_1 = arith.constant 0 : index
    %0 = vector.load %arg2[%c0, %c0_0, %c0_1] : memref<1x256x4xf32, #tpu.memory_space<vmem>>, vector<1x256x4xf32>
    %1 = vector.shape_cast %0 : vector<1x256x4xf32> to vector<256x4xf32>
    %c0_2 = arith.constant 0 : index
    %c0_3 = arith.constant 0 : index
    %c0_4 = arith.constant 0 : index
    %2 = vector.load %arg3[%c0_2, %c0_3, %c0_4] : memref<2x4x16xf32, #tpu.memory_space<vmem>>, vector<1x4x16xf32>
    %3 = vector.shape_cast %2 : vector<1x4x16xf32> to vector<4x16xf32>
    %cst = arith.constant dense<0.000000e+00> : vector<256x16xf32>
    %4 = tpu.matmul %1, %3, %cst {dimension_numbers = #tpu.dot_dimension_numbers<[1], [0], [0], [1], [0, 0, 1, 1], [], []>} : vector<256x4xf32>, vector<4x16xf32>, vector<256x16xf32> -> vector<256x16xf32>
    %5 = vector.shape_cast %4 : vector<256x16xf32> to vector<16x16x16xf32>
    %c0_5 = arith.constant 0 : index
    %c0_6 = arith.constant 0 : index
    %c0_7 = arith.constant 0 : index
    %c0_8 = arith.constant 0 : index
    %6 = vector.load %arg4[%c0_5, %c0_6, %c0_7, %c0_8] : memref<16x2x16x16xf32, #tpu.memory_space<vmem>>, vector<16x1x16x16xf32>
    %7 = vector.shape_cast %6 : vector<16x1x16x16xf32> to vector<16x16x16xf32>
    %8 = vector.shape_cast %5 : vector<16x16x16xf32> to vector<16x1x16x16xf32>
    tpu.vector_store %arg4[%c0_5, %c0_6, %c0_7, %c0_8], %8 {strides = array<i32>} : memref<16x2x16x16xf32, #tpu.memory_space<vmem>>, vector<16x1x16x16xf32>,
    %c1 = arith.constant 1 : index
    %c0_9 = arith.constant 0 : index
    %c0_10 = arith.constant 0 : index
    %9 = vector.load %arg3[%c1, %c0_9, %c0_10] : memref<2x4x16xf32, #tpu.memory_space<vmem>>, vector<1x4x16xf32>
    %10 = vector.shape_cast %9 : vector<1x4x16xf32> to vector<4x16xf32>
    %cst_11 = arith.constant dense<0.000000e+00> : vector<256x16xf32>
    %11 = tpu.matmul %1, %10, %cst_11 {dimension_numbers = #tpu.dot_dimension_numbers<[1], [0], [0], [1], [0, 0, 1, 1], [], []>} : vector<256x4xf32>, vector<4x16xf32>, vector<256x16xf32> -> vector<256x16xf32>
    %12 = vector.shape_cast %11 : vector<256x16xf32> to vector<16x16x16xf32>
    %c0_12 = arith.constant 0 : index
    %c1_13 = arith.constant 1 : index
    %c0_14 = arith.constant 0 : index
    %c0_15 = arith.constant 0 : index
    %13 = vector.load %arg4[%c0_12, %c1_13, %c0_14, %c0_15] : memref<16x2x16x16xf32, #tpu.memory_space<vmem>>, vector<16x1x16x16xf32>
    %14 = vector.shape_cast %13 : vector<16x1x16x16xf32> to vector<16x16x16xf32>
    %15 = vector.shape_cast %12 : vector<16x16x16xf32> to vector<16x1x16x16xf32>
    tpu.vector_store %arg4[%c0_12, %c1_13, %c0_14, %c0_15], %15 {strides = array<i32>} : memref<16x2x16x16xf32, #tpu.memory_space<vmem>>, vector<16x1x16x16xf32>,
    return
  }
  func.func @transform_0(%arg0: i32, %arg1: i32) -> (i32, i32, i32) {
    %c0_i32 = arith.constant 0 : i32
    %c0_i32_0 = arith.constant 0 : i32
    return %arg0, %arg1, %c0_i32 : i32, i32, i32
  }
  func.func @transform_1(%arg0: i32, %arg1: i32) -> (i32, i32, i32) {
    %c0_i32 = arith.constant 0 : i32
    %c0_i32_0 = arith.constant 0 : i32
    %c0_i32_1 = arith.constant 0 : i32
    %c0_i32_2 = arith.constant 0 : i32
    return %c0_i32, %c0_i32_0, %c0_i32_1 : i32, i32, i32
  }
  func.func @transform_2(%arg0: i32, %arg1: i32) -> (i32, i32, i32, i32) {
    %c1_i32 = arith.constant 1 : i32
    %0 = arith.muli %arg0, %c1_i32 : i32
    %1 = arith.addi %0, %arg1 : i32
    %c0_i32 = arith.constant 0 : i32
    %c0_i32_0 = arith.constant 0 : i32
    %c0_i32_1 = arith.constant 0 : i32
    %c0_i32_2 = arith.constant 0 : i32
    return %1, %c0_i32, %c0_i32_0, %c0_i32_1 : i32, i32, i32, i32
  }
}

</mosaic_0001>

<llo_original>
// kernel: tpu_custom_call.1
$region0: #{tpu_custom_call.1}
  #allocation0 [shape = 'u32[]', space=smem, size = 0x4, offset = 0x4, fixed_abs, tag = 'smem constant byte address 0x4 - core index']
  #allocation1 [shape = 'u32[72,128]{1,0:T(1,128)}', space=vmem, size = 0x9000, scoped, tag = 'internal scratch']
  %s0 = inlined_call_operand.vmem [shape: f32[2,256,4], index: 0, kind: input, shape index: {}]
  %s1 = inlined_call_operand.vmem [shape: f32[2,4,16], index: 1, kind: input, shape index: {}]
  %s2 = inlined_call_operand.vmem [shape: f32[32,2,16,16], index: 2, kind: output, shape index: {}]
  %s3 = sld [smem:[#allocation0]]
  $region41: #{tpu_custom_call.1} parent=0
    _
  %s5 = ssub.s32 1, %s3
  %s6 = scalar_select 0, %s5, %s3
  loop: start=0, step=1, limit=4
  $region2: #{tpu_custom_call.1} parent=0 // loop_pre_header
    _
  $region3: #{tpu_custom_call.1} parent=0 // loop_header
    %s8 = sphi 0, %s12
    %p9 = scmp.ge.s32.totalorder %s8, 4
    %s15 = sphi 0, %s27
    %s16 = sphi 0, %s23
    %s17 = sphi 0, %s15
    %s18 = sphi 0, %s16
    %s19 = sphi 0, %s17
    %s20 = sphi 0, %s18
    %s32 = sphi 0, %s34
    %s35 = sphi 0, %s32
    %s36 = sphi 0, %s35
    %s52 = sphi 0, %s36
    %s56 = sphi 0, %s56
    %s58 = sphi 0, %s56
    %s59 = sphi 0, %s58
    %s73 = sphi 0, %s59
    %s81 = sphi 0, %s83
    %s84 = sphi 0, %s81
    %s85 = sphi 0, %s84
    %s101 = sphi 0, %s85
  $region4: #{tpu_custom_call.1} parent=0 // loop_header_branch
    %11 = sbr.rel (%p9) target = $region8
  $region5: #{tpu_custom_call.1} parent=0 // loop_body
    %s13 = ssub.s32 %s8, 1
    %s14 = ssub.s32 %s8, 2
    %s21 = sadd.s32 1, %s16
    %p22 = scmp.ge.s32.totalorder %s21, 1
    %s23 = scalar_select %p22, 0, %s21
    %s24 = sadd.s32 1, %s15
    %s25 = scalar_select %p22, %s24, %s15
    %p26 = scmp.ge.s32.totalorder %s25, 2
    %s27 = scalar_select %p26, 0, %s25
    %s28 = ssub.s32 %s15, %s27
    %s29 = ssub.s32 %s16, %s23
    %s30 = sor.u32 %s28, %s29
    %p31 = scmp.eq.s32.totalorder %s30, 0
    %s33 = sadd.s32 %s32, 1
    %s34 = scalar_select %p31, %s32, %s33
    %p37 = pneg %p31
    %p38 = scmp.eq.s32.totalorder %s8, 1
    %p39 = por %p37, %p38
    %p40 = scmp.ne.s32.totalorder %s32, %s35
    %p41 = scmp.eq.s32.totalorder %s8, 0
    %p42 = por %p40, %p41
    %p43 = scmp.ne.s32.totalorder %s32, %s35
    %p44 = scmp.eq.s32.totalorder %s13, 1
    %p45 = por %p43, %p44
    %p46 = scmp.ne.s32.totalorder %s35, %s36
    %p47 = scmp.eq.s32.totalorder %s13, 0
    %p48 = por %p46, %p47
    %p49 = scmp.ne.s32.totalorder %s35, %s36
    %p50 = scmp.eq.s32.totalorder %s14, 1
    %p51 = por %p49, %p50
    %p53 = scmp.ne.s32.totalorder %s36, %s52
    %p54 = scmp.eq.s32.totalorder %s14, 0
    %p55 = por %p53, %p54
    %s57 = sadd.s32 %s56, 1
    %p60 = scmp.eq.s32.totalorder %s8, 1
    %p61 = scmp.ne.s32.totalorder %s56, %s58
    %p62 = scmp.eq.s32.totalorder %s8, 0
    %p63 = por %p61, %p62
    %p64 = scmp.ne.s32.totalorder %s56, %s58
    %p65 = scmp.eq.s32.totalorder %s13, 1
    %p66 = por %p64, %p65
    %p67 = scmp.ne.s32.totalorder %s58, %s59
    %p68 = scmp.eq.s32.totalorder %s13, 0
    %p69 = por %p67, %p68
    %p70 = scmp.ne.s32.totalorder %s58, %s59
    %p71 = scmp.eq.s32.totalorder %s14, 1
    %p72 = por %p70, %p71
    %p74 = scmp.ne.s32.totalorder %s59, %s73
    %p75 = scmp.eq.s32.totalorder %s14, 0
    %p76 = por %p74, %p75
    %s77 = sadd.s32 %s15, %s16
    %s78 = sadd.s32 %s27, %s23
    %s79 = ssub.s32 %s77, %s78
    %p80 = scmp.eq.s32.totalorder %s79, 0
    %s82 = sadd.s32 %s81, 1
    %s83 = scalar_select %p80, %s81, %s82
    %p86 = pneg %p80
    %p87 = scmp.eq.s32.totalorder %s8, 1
    %p88 = por %p86, %p87
    %p89 = scmp.ne.s32.totalorder %s81, %s84
    %p90 = scmp.eq.s32.totalorder %s8, 0
    %p91 = por %p89, %p90
    %p92 = scmp.ne.s32.totalorder %s81, %s84
    %p93 = scmp.eq.s32.totalorder %s13, 1
    %p94 = por %p92, %p93
    %p95 = scmp.ne.s32.totalorder %s84, %s85
    %p96 = scmp.eq.s32.totalorder %s13, 0
    %p97 = por %p95, %p96
    %p98 = scmp.ne.s32.totalorder %s84, %s85
    %p99 = scmp.eq.s32.totalorder %s14, 1
    %p100 = por %p98, %p99
    %p102 = scmp.ne.s32.totalorder %s85, %s101
    %p103 = scmp.eq.s32.totalorder %s14, 0
    %p104 = por %p102, %p103
    %p105 = scmp.le.s32.totalorder 1, %s8
    %p106 = scmp.lt.s32.totalorder %s8, 3
    %p107 = pnand %p105, %p106
    %p108 = pneg %p107
    // Predicated region
    $region9: #{tpu_custom_call.1} parent=5 // pred_check
      _
    $region10: #{tpu_custom_call.1} parent=5 // pred_check_branch
      %110 = sbr.rel (%p107) target = $region12
    $region11: #{tpu_custom_call.1} parent=5 // pred_region
      %s111 = ssub.s32 %s8, 1
      // Predicated region
      $region13: #{tpu_custom_call.1} parent=11 // pred_check
        %p112 = pneg %p69
      $region14: #{tpu_custom_call.1} parent=11 // pred_check_branch
        %114 = sbr.rel (%p112) target = $region16
      $region15: #{tpu_custom_call.1} parent=11 // pred_region
        _
      $region16: #{tpu_custom_call.1} parent=11 // pred_fallthru
        _
    $region12: #{tpu_custom_call.1} parent=5 // pred_fallthru
      _
    %p115 = scmp.lt.s32.totalorder %s8, 2
    // Predicated region
    $region17: #{tpu_custom_call.1} parent=5 // pred_check
      %p116 = pneg %p115
    $region18: #{tpu_custom_call.1} parent=5 // pred_check_branch
      %118 = sbr.rel (%p116) target = $region20
    $region19: #{tpu_custom_call.1} parent=5 // pred_region
      // Predicated region
      $region21: #{tpu_custom_call.1} parent=19 // pred_check
        %p119 = pneg %p42
      $region22: #{tpu_custom_call.1} parent=19 // pred_check_branch
        %121 = sbr.rel (%p119) target = $region24
      $region23: #{tpu_custom_call.1} parent=19 // pred_region
        %s122 = smul.u32 32, %s16
        %p123 = scmp.lt.s32.totalorder %s15, 1
        %s124 = scalar_select %p123, %s15, 1
        %p125 = scmp.lt.s32.totalorder %s122, 31
        %s126 = scalar_select %p125, %s122, 31
        %s127 = smul.addr %s124, 32
        %s128 = sadd.s32 %s126, %s127
        %s129 = smul.addr %s128, 8
        %s130 = scalar_lea.vmem %s0, %s129
        %s131 = smul.u32 32, %s16
      $region24: #{tpu_custom_call.1} parent=19 // pred_fallthru
        _
    $region20: #{tpu_custom_call.1} parent=5 // pred_fallthru
      _
    %p132 = scmp.le.s32.totalorder 1, %s8
    %p133 = scmp.lt.s32.totalorder %s8, 3
    %p134 = pnand %p132, %p133
    %p135 = pneg %p134
    // Predicated region
    $region25: #{tpu_custom_call.1} parent=5 // pred_check
      _
    $region26: #{tpu_custom_call.1} parent=5 // pred_check_branch
      %137 = sbr.rel (%p134) target = $region28
    $region27: #{tpu_custom_call.1} parent=5 // pred_region
      %s138 = ssub.s32 %s8, 1
      %s139 = smul.u32 32, %s18
      %p140 = scmp.lt.s32.totalorder %s17, 1
      %s141 = scalar_select %p140, %s17, 1
      %p142 = scmp.lt.s32.totalorder %s139, 31
      %s143 = scalar_select %p142, %s139, 31
      %s144 = smul.addr %s141, 32
      %s145 = sadd.s32 %s143, %s144
      %s146 = smul.addr %s145, 8
      %s147 = scalar_lea.vmem %s0, %s146
      %p148 = pneg %p48
      %p149 = pneg %p45
      %p150 = pneg %p69
      %p151 = pneg %p66
      %p152 = pneg %p97
      %p153 = pneg %p94
      %s154 = sadd.s32 %s17, %s18
      %s155 = smul.u32 16, %s154
      %p156 = scmp.lt.s32.totalorder %s155, 31
      %s157 = scalar_select %p156, %s155, 31
      %s158 = smul.addr %s157, 4
      %s159 = smul.addr %s158, 8
      %s160 = scalar_lea.vmem %s2, %s159
      %s161 = smul.u32 32, %s18
      %p162 = scmp.lt.s32.totalorder %s17, 1
      %s163 = scalar_select %p162, %s17, 1
      %p164 = scmp.lt.s32.totalorder %s161, 31
      %s165 = scalar_select %p164, %s161, 31
      %s166 = smul.addr %s163, 32
      %s167 = sadd.s32 %s165, %s166
      %s168 = smul.addr %s167, 8
      %s169 = scalar_lea.vmem %s0, %s168
      %s170 = smul.u32 32, %s18
      %s171 = sadd.s32 %s17, %s18
      %s172 = smul.u32 16, %s171
      %p173 = scmp.lt.s32.totalorder %s172, 31
      %s174 = scalar_select %p173, %s172, 31
      %s175 = smul.addr %s174, 4
      %s176 = smul.addr %s175, 8
      %s177 = scalar_lea.vmem %s2, %s176
      %s178 = sadd.s32 %s17, %s18
      %s179 = smul.u32 16, %s178
      %v180 = vld [vmem:[%s169] sm:$0xff]
      %v181 = vld [vmem:[%s169 + $0x8] sm:$0xff]
      %v182 = vld [vmem:[%s169 + $0x10] sm:$0xff]
      %v183 = vld [vmem:[%s169 + $0x18] sm:$0xff]
      %v184 = vld [vmem:[%s169 + $0x20] sm:$0xff]
      %v185 = vld [vmem:[%s169 + $0x28] sm:$0xff]
      %v186 = vld [vmem:[%s169 + $0x30] sm:$0xff]
      %v187 = vld [vmem:[%s169 + $0x38] sm:$0xff]
      %v188 = vld [vmem:[%s169 + $0x40] sm:$0xff]
      %v189 = vld [vmem:[%s169 + $0x48] sm:$0xff]
      %v190 = vld [vmem:[%s169 + $0x50] sm:$0xff]
      %v191 = vld [vmem:[%s169 + $0x58] sm:$0xff]
      %v192 = vld [vmem:[%s169 + $0x60] sm:$0xff]
      %v193 = vld [vmem:[%s169 + $0x68] sm:$0xff]
      %v194 = vld [vmem:[%s169 + $0x70] sm:$0xff]
      %v195 = vld [vmem:[%s169 + $0x78] sm:$0xff]
      %v196 = vld [vmem:[%s169 + $0x80] sm:$0xff]
      %v197 = vld [vmem:[%s169 + $0x88] sm:$0xff]
      %v198 = vld [vmem:[%s169 + $0x90] sm:$0xff]
      %v199 = vld [vmem:[%s169 + $0x98] sm:$0xff]
      %v200 = vld [vmem:[%s169 + $0xa0] sm:$0xff]
      %v201 = vld [vmem:[%s169 + $0xa8] sm:$0xff]
      %v202 = vld [vmem:[%s169 + $0xb0] sm:$0xff]
      %v203 = vld [vmem:[%s169 + $0xb8] sm:$0xff]
      %v204 = vld [vmem:[%s169 + $0xc0] sm:$0xff]
      %v205 = vld [vmem:[%s169 + $0xc8] sm:$0xff]
      %v206 = vld [vmem:[%s169 + $0xd0] sm:$0xff]
      %v207 = vld [vmem:[%s169 + $0xd8] sm:$0xff]
      %v208 = vld [vmem:[%s169 + $0xe0] sm:$0xff]
      %v209 = vld [vmem:[%s169 + $0xe8] sm:$0xff]
      %v210 = vld [vmem:[%s169 + $0xf0] sm:$0xff]
      %v211 = vld [vmem:[%s169 + $0xf8] sm:$0xff]
      %v212 = vld [vmem:[%s1] sm:$0xf]
      %vm213 = vcmask 31744
      %v215 = vsel %vm213, %v180, 0
      %v218 = vsel %vm213, %v181, 0
      %v221 = vsel %vm213, %v182, 0
      %v224 = vsel %vm213, %v183, 0
      %v227 = vsel %vm213, %v184, 0
      %v230 = vsel %vm213, %v185, 0
      %v233 = vsel %vm213, %v186, 0
      %v236 = vsel %vm213, %v187, 0
      %v239 = vsel %vm213, %v188, 0
      %v242 = vsel %vm213, %v189, 0
      %v245 = vsel %vm213, %v190, 0
      %v248 = vsel %vm213, %v191, 0
      %v251 = vsel %vm213, %v192, 0
      %v254 = vsel %vm213, %v193, 0
      %v257 = vsel %vm213, %v194, 0
      %v260 = vsel %vm213, %v195, 0
      %v263 = vsel %vm213, %v196, 0
      %v266 = vsel %vm213, %v197, 0
      %v269 = vsel %vm213, %v198, 0
      %v272 = vsel %vm213, %v199, 0
      %v275 = vsel %vm213, %v200, 0
      %v278 = vsel %vm213, %v201, 0
      %v281 = vsel %vm213, %v202, 0
      %v284 = vsel %vm213, %v203, 0
      %v287 = vsel %vm213, %v204, 0
      %v290 = vsel %vm213, %v205, 0
      %v293 = vsel %vm213, %v206, 0
      %v296 = vsel %vm213, %v207, 0
      %v299 = vsel %vm213, %v208, 0
      %v302 = vsel %vm213, %v209, 0
      %v305 = vsel %vm213, %v210, 0
      %v308 = vsel %vm213, %v211, 0
      %vm310 = vcmask 1043456
      %v312 = vsel %vm310, %v212, 0
      %314 = vmatpush.msra.mxu0 0.0
      %315 = vmatpush.msra.mxu0 0.0
      %316 = vmatpush.msra.mxu0 0.0
      %317 = vmatpush.msra.mxu0 0.0
      %318 = vmatpush.msra.mxu0 0.0
      %319 = vmatpush.msra.mxu0 0.0
      %320 = vmatpush.msra.mxu0 0.0
      %321 = vmatpush.msra.mxu0 0.0
      %322 = vmatpush.msra.mxu0 0.0
      %323 = vmatpush.msra.mxu0 0.0
      %324 = vmatpush.msra.mxu0 0.0
      %325 = vmatpush.msra.mxu0 0.0
      %326 = vmatpush.msra.mxu0 0.0
      %327 = vmatpush.msra.mxu0 0.0
      %328 = vmatpush.msra.mxu0 0.0
      %329 = vmatpush.msra.mxu0 %v312
      %330 = vmatmul.f32.gmra.mxu0 %v215
      %v331 = vpop.f32.mrf.mxu0
      %v332 = vadd.f32 0.0, %v331
      %333 = vmatmul.f32.gmra.mxu0 %v218
      %v334 = vpop.f32.mrf.mxu0
      %v335 = vadd.f32 0.0, %v334
      %336 = vmatmul.f32.gmra.mxu0 %v221
      %v337 = vpop.f32.mrf.mxu0
      %v338 = vadd.f32 0.0, %v337
      %339 = vmatmul.f32.gmra.mxu0 %v224
      %v340 = vpop.f32.mrf.mxu0
      %v341 = vadd.f32 0.0, %v340
      %342 = vmatmul.f32.gmra.mxu0 %v227
      %v343 = vpop.f32.mrf.mxu0
      %v344 = vadd.f32 0.0, %v343
      %345 = vmatmul.f32.gmra.mxu0 %v230
      %v346 = vpop.f32.mrf.mxu0
      %v347 = vadd.f32 0.0, %v346
      %348 = vmatmul.f32.gmra.mxu0 %v233
      %v349 = vpop.f32.mrf.mxu0
      %v350 = vadd.f32 0.0, %v349
      %351 = vmatmul.f32.gmra.mxu0 %v236
      %v352 = vpop.f32.mrf.mxu0
      %v353 = vadd.f32 0.0, %v352
      %354 = vmatmul.f32.gmra.mxu0 %v239
      %v355 = vpop.f32.mrf.mxu0
      %v356 = vadd.f32 0.0, %v355
      %357 = vmatmul.f32.gmra.mxu0 %v242
      %v358 = vpop.f32.mrf.mxu0
      %v359 = vadd.f32 0.0, %v358
      %360 = vmatmul.f32.gmra.mxu0 %v245
      %v361 = vpop.f32.mrf.mxu0
      %v362 = vadd.f32 0.0, %v361
      %363 = vmatmul.f32.gmra.mxu0 %v248
      %v364 = vpop.f32.mrf.mxu0
      %v365 = vadd.f32 0.0, %v364
      %366 = vmatmul.f32.gmra.mxu0 %v251
      %v367 = vpop.f32.mrf.mxu0
      %v368 = vadd.f32 0.0, %v367
      %369 = vmatmul.f32.gmra.mxu0 %v254
      %v370 = vpop.f32.mrf.mxu0
      %v371 = vadd.f32 0.0, %v370
      %372 = vmatmul.f32.gmra.mxu0 %v257
      %v373 = vpop.f32.mrf.mxu0
      %v374 = vadd.f32 0.0, %v373
      %375 = vmatmul.f32.gmra.mxu0 %v260
      %v376 = vpop.f32.mrf.mxu0
      %v377 = vadd.f32 0.0, %v376
      %378 = vmatmul.f32.gmra.mxu0 %v263
      %v379 = vpop.f32.mrf.mxu0
      %v380 = vadd.f32 0.0, %v379
      %381 = vmatmul.f32.gmra.mxu0 %v266
      %v382 = vpop.f32.mrf.mxu0
      %v383 = vadd.f32 0.0, %v382
      %384 = vmatmul.f32.gmra.mxu0 %v269
      %v385 = vpop.f32.mrf.mxu0
      %v386 = vadd.f32 0.0, %v385
      %387 = vmatmul.f32.gmra.mxu0 %v272
      %v388 = vpop.f32.mrf.mxu0
      %v389 = vadd.f32 0.0, %v388
      %390 = vmatmul.f32.gmra.mxu0 %v275
      %v391 = vpop.f32.mrf.mxu0
      %v392 = vadd.f32 0.0, %v391
      %393 = vmatmul.f32.gmra.mxu0 %v278
      %v394 = vpop.f32.mrf.mxu0
      %v395 = vadd.f32 0.0, %v394
      %396 = vmatmul.f32.gmra.mxu0 %v281
      %v397 = vpop.f32.mrf.mxu0
      %v398 = vadd.f32 0.0, %v397
      %399 = vmatmul.f32.gmra.mxu0 %v284
      %v400 = vpop.f32.mrf.mxu0
      %v401 = vadd.f32 0.0, %v400
      %402 = vmatmul.f32.gmra.mxu0 %v287
      %v403 = vpop.f32.mrf.mxu0
      %v404 = vadd.f32 0.0, %v403
      %405 = vmatmul.f32.gmra.mxu0 %v290
      %v406 = vpop.f32.mrf.mxu0
      %v407 = vadd.f32 0.0, %v406
      %408 = vmatmul.f32.gmra.mxu0 %v293
      %v409 = vpop.f32.mrf.mxu0
      %v410 = vadd.f32 0.0, %v409
      %411 = vmatmul.f32.gmra.mxu0 %v296
      %v412 = vpop.f32.mrf.mxu0
      %v413 = vadd.f32 0.0, %v412
      %414 = vmatmul.f32.gmra.mxu0 %v299
      %v415 = vpop.f32.mrf.mxu0
      %v416 = vadd.f32 0.0, %v415
      %417 = vmatmul.f32.gmra.mxu0 %v302
      %v418 = vpop.f32.mrf.mxu0
      %v419 = vadd.f32 0.0, %v418
      %420 = vmatmul.f32.gmra.mxu0 %v305
      %v421 = vpop.f32.mrf.mxu0
      %v422 = vadd.f32 0.0, %v421
      %423 = vmatmul.f32.gmra.mxu0 %v308
      %v424 = vpop.f32.mrf.mxu0
      %v425 = vadd.f32 0.0, %v424
      %426 = vdwg.mxu0
      %vm427 = vcmask 130048
      %428 = vst.msk [vmem:[%s177] sm:$0xff] %vm427, %v332
      %429 = vst.msk [vmem:[%s177 + $0x8] sm:$0xff] %vm427, %v335
      %430 = vst.msk [vmem:[%s177 + $0x20] sm:$0xff] %vm427, %v338
      %431 = vst.msk [vmem:[%s177 + $0x28] sm:$0xff] %vm427, %v341
      %432 = vst.msk [vmem:[%s177 + $0x40] sm:$0xff] %vm427, %v344
      %433 = vst.msk [vmem:[%s177 + $0x48] sm:$0xff] %vm427, %v347
      %434 = vst.msk [vmem:[%s177 + $0x60] sm:$0xff] %vm427, %v350
      %435 = vst.msk [vmem:[%s177 + $0x68] sm:$0xff] %vm427, %v353
      %436 = vst.msk [vmem:[%s177 + $0x80] sm:$0xff] %vm427, %v356
      %437 = vst.msk [vmem:[%s177 + $0x88] sm:$0xff] %vm427, %v359
      %438 = vst.msk [vmem:[%s177 + $0xa0] sm:$0xff] %vm427, %v362
      %439 = vst.msk [vmem:[%s177 + $0xa8] sm:$0xff] %vm427, %v365
      %440 = vst.msk [vmem:[%s177 + $0xc0] sm:$0xff] %vm427, %v368
      %441 = vst.msk [vmem:[%s177 + $0xc8] sm:$0xff] %vm427, %v371
      %442 = vst.msk [vmem:[%s177 + $0xe0] sm:$0xff] %vm427, %v374
      %443 = vst.msk [vmem:[%s177 + $0xe8] sm:$0xff] %vm427, %v377
      %444 = vst.msk [vmem:[%s177 + $0x100] sm:$0xff] %vm427, %v380
      %445 = vst.msk [vmem:[%s177 + $0x108] sm:$0xff] %vm427, %v383
      %446 = vst.msk [vmem:[%s177 + $0x120] sm:$0xff] %vm427, %v386
      %447 = vst.msk [vmem:[%s177 + $0x128] sm:$0xff] %vm427, %v389
      %448 = vst.msk [vmem:[%s177 + $0x140] sm:$0xff] %vm427, %v392
      %449 = vst.msk [vmem:[%s177 + $0x148] sm:$0xff] %vm427, %v395
      %450 = vst.msk [vmem:[%s177 + $0x160] sm:$0xff] %vm427, %v398
      %451 = vst.msk [vmem:[%s177 + $0x168] sm:$0xff] %vm427, %v401
      %452 = vst.msk [vmem:[%s177 + $0x180] sm:$0xff] %vm427, %v404
      %453 = vst.msk [vmem:[%s177 + $0x188] sm:$0xff] %vm427, %v407
      %454 = vst.msk [vmem:[%s177 + $0x1a0] sm:$0xff] %vm427, %v410
      %455 = vst.msk [vmem:[%s177 + $0x1a8] sm:$0xff] %vm427, %v413
      %456 = vst.msk [vmem:[%s177 + $0x1c0] sm:$0xff] %vm427, %v416
      %457 = vst.msk [vmem:[%s177 + $0x1c8] sm:$0xff] %vm427, %v419
      %458 = vst.msk [vmem:[%s177 + $0x1e0] sm:$0xff] %vm427, %v422
      %459 = vst.msk [vmem:[%s177 + $0x1e8] sm:$0xff] %vm427, %v425
      %s460 = scalar_lea.vmem %s1, 4
      %v461 = vld [vmem:[%s460] sm:$0xf]
      %v463 = vsel %vm310, %v461, 0
      %465 = vmatpush.msra.mxu0 0.0
      %466 = vmatpush.msra.mxu0 0.0
      %467 = vmatpush.msra.mxu0 0.0
      %468 = vmatpush.msra.mxu0 0.0
      %469 = vmatpush.msra.mxu0 0.0
      %470 = vmatpush.msra.mxu0 0.0
      %471 = vmatpush.msra.mxu0 0.0
      %472 = vmatpush.msra.mxu0 0.0
      %473 = vmatpush.msra.mxu0 0.0
      %474 = vmatpush.msra.mxu0 0.0
      %475 = vmatpush.msra.mxu0 0.0
      %476 = vmatpush.msra.mxu0 0.0
      %477 = vmatpush.msra.mxu0 0.0
      %478 = vmatpush.msra.mxu0 0.0
      %479 = vmatpush.msra.mxu0 0.0
      %480 = vmatpush.msra.mxu0 %v463
      %481 = vmatmul.f32.gmra.mxu0 %v215
      %v482 = vpop.f32.mrf.mxu0
      %v483 = vadd.f32 0.0, %v482
      %484 = vmatmul.f32.gmra.mxu0 %v218
      %v485 = vpop.f32.mrf.mxu0
      %v486 = vadd.f32 0.0, %v485
      %487 = vmatmul.f32.gmra.mxu0 %v221
      %v488 = vpop.f32.mrf.mxu0
      %v489 = vadd.f32 0.0, %v488
      %490 = vmatmul.f32.gmra.mxu0 %v224
      %v491 = vpop.f32.mrf.mxu0
      %v492 = vadd.f32 0.0, %v491
      %493 = vmatmul.f32.gmra.mxu0 %v227
      %v494 = vpop.f32.mrf.mxu0
      %v495 = vadd.f32 0.0, %v494
      %496 = vmatmul.f32.gmra.mxu0 %v230
      %v497 = vpop.f32.mrf.mxu0
      %v498 = vadd.f32 0.0, %v497
      %499 = vmatmul.f32.gmra.mxu0 %v233
      %v500 = vpop.f32.mrf.mxu0
      %v501 = vadd.f32 0.0, %v500
      %502 = vmatmul.f32.gmra.mxu0 %v236
      %v503 = vpop.f32.mrf.mxu0
      %v504 = vadd.f32 0.0, %v503
      %505 = vmatmul.f32.gmra.mxu0 %v239
      %v506 = vpop.f32.mrf.mxu0
      %v507 = vadd.f32 0.0, %v506
      %508 = vmatmul.f32.gmra.mxu0 %v242
      %v509 = vpop.f32.mrf.mxu0
      %v510 = vadd.f32 0.0, %v509
      %511 = vmatmul.f32.gmra.mxu0 %v245
      %v512 = vpop.f32.mrf.mxu0
      %v513 = vadd.f32 0.0, %v512
      %514 = vmatmul.f32.gmra.mxu0 %v248
      %v515 = vpop.f32.mrf.mxu0
      %v516 = vadd.f32 0.0, %v515
      %517 = vmatmul.f32.gmra.mxu0 %v251
      %v518 = vpop.f32.mrf.mxu0
      %v519 = vadd.f32 0.0, %v518
      %520 = vmatmul.f32.gmra.mxu0 %v254
      %v521 = vpop.f32.mrf.mxu0
      %v522 = vadd.f32 0.0, %v521
      %523 = vmatmul.f32.gmra.mxu0 %v257
      %v524 = vpop.f32.mrf.mxu0
      %v525 = vadd.f32 0.0, %v524
      %526 = vmatmul.f32.gmra.mxu0 %v260
      %v527 = vpop.f32.mrf.mxu0
      %v528 = vadd.f32 0.0, %v527
      %529 = vmatmul.f32.gmra.mxu0 %v263
      %v530 = vpop.f32.mrf.mxu0
      %v531 = vadd.f32 0.0, %v530
      %532 = vmatmul.f32.gmra.mxu0 %v266
      %v533 = vpop.f32.mrf.mxu0
      %v534 = vadd.f32 0.0, %v533
      %535 = vmatmul.f32.gmra.mxu0 %v269
      %v536 = vpop.f32.mrf.mxu0
      %v537 = vadd.f32 0.0, %v536
      %538 = vmatmul.f32.gmra.mxu0 %v272
      %v539 = vpop.f32.mrf.mxu0
      %v540 = vadd.f32 0.0, %v539
      %541 = vmatmul.f32.gmra.mxu0 %v275
      %v542 = vpop.f32.mrf.mxu0
      %v543 = vadd.f32 0.0, %v542
      %544 = vmatmul.f32.gmra.mxu0 %v278
      %v545 = vpop.f32.mrf.mxu0
      %v546 = vadd.f32 0.0, %v545
      %547 = vmatmul.f32.gmra.mxu0 %v281
      %v548 = vpop.f32.mrf.mxu0
      %v549 = vadd.f32 0.0, %v548
      %550 = vmatmul.f32.gmra.mxu0 %v284
      %v551 = vpop.f32.mrf.mxu0
      %v552 = vadd.f32 0.0, %v551
      %553 = vmatmul.f32.gmra.mxu0 %v287
      %v554 = vpop.f32.mrf.mxu0
      %v555 = vadd.f32 0.0, %v554
      %556 = vmatmul.f32.gmra.mxu0 %v290
      %v557 = vpop.f32.mrf.mxu0
      %v558 = vadd.f32 0.0, %v557
      %559 = vmatmul.f32.gmra.mxu0 %v293
      %v560 = vpop.f32.mrf.mxu0
      %v561 = vadd.f32 0.0, %v560
      %562 = vmatmul.f32.gmra.mxu0 %v296
      %v563 = vpop.f32.mrf.mxu0
      %v564 = vadd.f32 0.0, %v563
      %565 = vmatmul.f32.gmra.mxu0 %v299
      %v566 = vpop.f32.mrf.mxu0
      %v567 = vadd.f32 0.0, %v566
      %568 = vmatmul.f32.gmra.mxu0 %v302
      %v569 = vpop.f32.mrf.mxu0
      %v570 = vadd.f32 0.0, %v569
      %571 = vmatmul.f32.gmra.mxu0 %v305
      %v572 = vpop.f32.mrf.mxu0
      %v573 = vadd.f32 0.0, %v572
      %574 = vmatmul.f32.gmra.mxu0 %v308
      %v575 = vpop.f32.mrf.mxu0
      %v576 = vadd.f32 0.0, %v575
      %577 = vdwg.mxu0
      %s578 = scalar_lea.vmem %s177, 16
      %579 = vst.msk [vmem:[%s578] sm:$0xff] %vm427, %v483
      %580 = vst.msk [vmem:[%s578 + $0x8] sm:$0xff] %vm427, %v486
      %581 = vst.msk [vmem:[%s578 + $0x20] sm:$0xff] %vm427, %v489
      %582 = vst.msk [vmem:[%s578 + $0x28] sm:$0xff] %vm427, %v492
      %583 = vst.msk [vmem:[%s578 + $0x40] sm:$0xff] %vm427, %v495
      %584 = vst.msk [vmem:[%s578 + $0x48] sm:$0xff] %vm427, %v498
      %585 = vst.msk [vmem:[%s578 + $0x60] sm:$0xff] %vm427, %v501
      %586 = vst.msk [vmem:[%s578 + $0x68] sm:$0xff] %vm427, %v504
      %587 = vst.msk [vmem:[%s578 + $0x80] sm:$0xff] %vm427, %v507
      %588 = vst.msk [vmem:[%s578 + $0x88] sm:$0xff] %vm427, %v510
      %589 = vst.msk [vmem:[%s578 + $0xa0] sm:$0xff] %vm427, %v513
      %590 = vst.msk [vmem:[%s578 + $0xa8] sm:$0xff] %vm427, %v516
      %591 = vst.msk [vmem:[%s578 + $0xc0] sm:$0xff] %vm427, %v519
      %592 = vst.msk [vmem:[%s578 + $0xc8] sm:$0xff] %vm427, %v522
      %593 = vst.msk [vmem:[%s578 + $0xe0] sm:$0xff] %vm427, %v525
      %594 = vst.msk [vmem:[%s578 + $0xe8] sm:$0xff] %vm427, %v528
      %595 = vst.msk [vmem:[%s578 + $0x100] sm:$0xff] %vm427, %v531
      %596 = vst.msk [vmem:[%s578 + $0x108] sm:$0xff] %vm427, %v534
      %597 = vst.msk [vmem:[%s578 + $0x120] sm:$0xff] %vm427, %v537
      %598 = vst.msk [vmem:[%s578 + $0x128] sm:$0xff] %vm427, %v540
      %599 = vst.msk [vmem:[%s578 + $0x140] sm:$0xff] %vm427, %v543
      %600 = vst.msk [vmem:[%s578 + $0x148] sm:$0xff] %vm427, %v546
      %601 = vst.msk [vmem:[%s578 + $0x160] sm:$0xff] %vm427, %v549
      %602 = vst.msk [vmem:[%s578 + $0x168] sm:$0xff] %vm427, %v552
      %603 = vst.msk [vmem:[%s578 + $0x180] sm:$0xff] %vm427, %v555
      %604 = vst.msk [vmem:[%s578 + $0x188] sm:$0xff] %vm427, %v558
      %605 = vst.msk [vmem:[%s578 + $0x1a0] sm:$0xff] %vm427, %v561
      %606 = vst.msk [vmem:[%s578 + $0x1a8] sm:$0xff] %vm427, %v564
      %607 = vst.msk [vmem:[%s578 + $0x1c0] sm:$0xff] %vm427, %v567
      %608 = vst.msk [vmem:[%s578 + $0x1c8] sm:$0xff] %vm427, %v570
      %609 = vst.msk [vmem:[%s578 + $0x1e0] sm:$0xff] %vm427, %v573
      %610 = vst.msk [vmem:[%s578 + $0x1e8] sm:$0xff] %vm427, %v576
      %s611 = sadd.s32 %s17, %s18
      %s612 = smul.u32 16, %s611
      %p613 = scmp.lt.s32.totalorder %s612, 31
      %s614 = scalar_select %p613, %s612, 31
      %s615 = smul.addr %s614, 4
      %s616 = smul.addr %s615, 8
      %s617 = scalar_lea.vmem %s2, %s616
      // Predicated region
      $region29: #{tpu_custom_call.1} parent=27 // pred_check
        %p618 = pneg %p94
      $region30: #{tpu_custom_call.1} parent=27 // pred_check_branch
        %620 = sbr.rel (%p618) target = $region32
      $region31: #{tpu_custom_call.1} parent=27 // pred_region
        %s621 = sadd.s32 %s17, %s18
        %s622 = smul.u32 16, %s621
      $region32: #{tpu_custom_call.1} parent=27 // pred_fallthru
        _
    $region28: #{tpu_custom_call.1} parent=5 // pred_fallthru
      _
    %p623 = scmp.le.s32.totalorder 2, %s8
    // Predicated region
    $region33: #{tpu_custom_call.1} parent=5 // pred_check
      %p624 = pneg %p623
    $region34: #{tpu_custom_call.1} parent=5 // pred_check_branch
      %626 = sbr.rel (%p624) target = $region36
    $region35: #{tpu_custom_call.1} parent=5 // pred_region
      %s627 = ssub.s32 %s8, 2
      // Predicated region
      $region37: #{tpu_custom_call.1} parent=35 // pred_check
        %p628 = pneg %p100
      $region38: #{tpu_custom_call.1} parent=35 // pred_check_branch
        %630 = sbr.rel (%p628) target = $region40
      $region39: #{tpu_custom_call.1} parent=35 // pred_region
        %s631 = sadd.s32 %s19, %s20
        %s632 = smul.u32 16, %s631
        %p633 = scmp.lt.s32.totalorder %s632, 31
        %s634 = scalar_select %p633, %s632, 31
        %s635 = smul.addr %s634, 4
        %s636 = smul.addr %s635, 8
        %s637 = scalar_lea.vmem %s2, %s636
      $region40: #{tpu_custom_call.1} parent=35 // pred_fallthru
        _
    $region36: #{tpu_custom_call.1} parent=5 // pred_fallthru
      _
  $region6: #{tpu_custom_call.1} parent=0 // loop_footer
    %s12 = sadd.s32 1, %s8
  $region7: #{tpu_custom_call.1} parent=0 // loop_footer_branch
    %7 = sbr.rel target = $region3
  $region8: #{tpu_custom_call.1} parent=0 // loop_exit
    _

</llo_original>
